<compile_context>
chip_gen: v7x
topology: tpu7x:2x2x1
jax: 0.10.0
libtpu: 0.0.40
codegen_flags: <defaults>
</compile_context>

<pallas_src>
import functools

import jax
import jax.numpy as jnp
from jax import lax
from jax.experimental import pallas as pl
from jax.experimental.pallas import tpu as pltpu


def _round_up(x, m):
    return ((x + m - 1) // m) * m


def _choose_tile(dim, align, cap, slack=0.07):
    """Pick a tile size for one dimension.

    If the whole dim fits under `cap`, use a single full-extent tile (no
    padding, legal regardless of (8,128) alignment).  Otherwise pick a
    multiple of `align` <= cap, preferring the largest tile whose padding
    overhead stays within `slack` of the minimum achievable.
    """
    cap = max(align, (cap // align) * align)
    if dim <= cap:
        return dim
    cands = []
    t = cap
    while t >= align:
        cands.append((_round_up(dim, t), t))
        t -= align
    min_pad = min(p for p, _ in cands)
    for padded, t in cands:          # ordered by decreasing tile size
        if padded <= min_pad * (1.0 + slack):
            return t
    return align


def _make_linear_kernel(has_bias, use_acc, compute_dtype):
    """Tiled-matmul kernel body. Grid = (M tiles, N tiles, K tiles), K last.

    The output block index is constant across k, so for f32 outputs we
    accumulate directly into the resident o_ref (no scratch, no finalize
    copy); otherwise a f32 VMEM scratch is used and cast once at the last K
    step.  Bias is added exactly once.
    """

    def kernel(*refs):
        if has_bias:
            x_ref, w_ref, b_ref = refs[0], refs[1], refs[2]
            rest = refs[3:]
        else:
            x_ref, w_ref = refs[0], refs[1]
            b_ref = None
            rest = refs[2:]
        o_ref = rest[0]
        acc_ref = rest[1] if use_acc else o_ref

        k = pl.program_id(2)

        @pl.when(k == 0)
        def _init():
            if has_bias and not use_acc:
                # Seed the resident f32 output tile with the bias.
                acc_ref[...] = jnp.broadcast_to(
                    b_ref[...].astype(jnp.float32), acc_ref.shape)
            else:
                acc_ref[...] = jnp.zeros_like(acc_ref)

        # Cast operand tiles in VMEM (no wrapper-side HBM copies). Contract
        # x's last dim against weight's last dim: [tm,tk] x [tn,tk] -> [tm,tn]
        # (trans_b-style matmul; no weight transpose copy in HBM).
        lhs = x_ref[...].astype(compute_dtype)
        rhs = w_ref[...].astype(compute_dtype)
        acc_ref[...] += lax.dot_general(
            lhs, rhs,
            dimension_numbers=(((1,), (1,)), ((), ())),
            preferred_element_type=jnp.float32,
        )

        if use_acc:
            @pl.when(k == pl.num_programs(2) - 1)
            def _finalize():
                res = acc_ref[...]
                if has_bias:
                    res = res + b_ref[...].astype(jnp.float32)
                o_ref[...] = res.astype(o_ref.dtype)

    return kernel


@functools.partial(jax.jit, static_argnames=("compute_dtype",))
def pallas_linear(x, weight, bias=None, *, compute_dtype=jnp.bfloat16):
    """y = x @ weight.T + bias, matching torch.nn.Linear semantics.

    x:      [..., in_features]
    weight: [out_features, in_features]  (PyTorch layout; never copied here)
    bias:   [out_features] or None
    compute_dtype: MXU operand dtype (default bf16; f32 accumulation always
        kept).  Pass jnp.float32 for exact f32 numerics.  For best bandwidth
        on weight-bound shapes, store the persistent weight in bf16.
    """
    *lead, K = x.shape
    N, K2 = weight.shape
    assert K == K2, "in_features mismatch"
    x2 = x.reshape(-1, K)
    B = x2.shape[0]

    out_dtype = x.dtype
    if compute_dtype is None:
        compute_dtype = jnp.promote_types(x.dtype, weight.dtype)
    compute_dtype = jnp.dtype(compute_dtype)
    use_acc = jnp.dtype(out_dtype) != jnp.dtype(jnp.float32)

    # Tile caps sized for the HBM operand dtypes (VMEM buffers hold the HBM
    # dtype; the compute cast happens in-kernel).
    in_item = max(jnp.dtype(x.dtype).itemsize, jnp.dtype(weight.dtype).itemsize)
    if in_item <= 2:
        cap_m, cap_n, cap_k = 512, 1024, 1024
    else:
        cap_m, cap_n, cap_k = 512, 512, 1024

    tm = _choose_tile(B, 8, cap_m)
    tn = _choose_tile(N, 128, cap_n)
    tk = _choose_tile(K, 128, cap_k)
    Mp, Np, Kp = _round_up(B, tm), _round_up(N, tn), _round_up(K, tk)

    # v7x has 2 TensorCores: ensure at least one "parallel" axis has >= 2
    # iterations (split N when it adds no padding). No-op on 1-TC chips.
    if Mp // tm == 1 and Np // tn == 1 and tn >= 256:
        tn_half = _round_up((tn + 1) // 2, 128)
        if _round_up(N, tn_half) == Np:
            tn = tn_half

    gm, gn, gk = Mp // tm, Np // tn, Kp // tk

    # Padding only when a dim is both multi-tile and misaligned (rare for
    # real model dims; the demo shapes below emit no pads at all).
    xp = x2 if (Mp == B and Kp == K) else jnp.pad(x2, ((0, Mp - B), (0, Kp - K)))
    wp = weight if (Np == N and Kp == K) else jnp.pad(
        weight, ((0, Np - N), (0, Kp - K)))

    x_spec = pl.BlockSpec((tm, tk), lambda i, j, k: (i, k))
    o_spec = pl.BlockSpec((tm, tn), lambda i, j, k: (i, j))
    if gm == 1 and gn * gk >= 3:
        # Skinny-M / decode: weight-bandwidth-bound; deepen weight buffering
        # so the sequential weight stream stays at HBM roofline.
        w_spec = pl.BlockSpec((tn, tk), lambda i, j, k: (j, k),
                              pipeline_mode=pl.Buffered(3))
    else:
        w_spec = pl.BlockSpec((tn, tk), lambda i, j, k: (j, k))

    in_specs = [x_spec, w_spec]
    operands = [xp, wp]
    if bias is not None:
        b2d = bias.reshape(1, N)
        if Np != N:
            b2d = jnp.pad(b2d, ((0, 0), (0, Np - N)))
        in_specs.append(pl.BlockSpec((1, tn), lambda i, j, k: (0, j)))
        operands.append(b2d)

    scratch_shapes = [pltpu.VMEM((tm, tn), jnp.float32)] if use_acc else []

    bytes_accessed = (Mp * Kp * jnp.dtype(xp.dtype).itemsize * gn       # x re-read per N tile
                      + Np * Kp * jnp.dtype(wp.dtype).itemsize * gm     # w re-read per M tile
                      + Mp * Np * jnp.dtype(out_dtype).itemsize)        # output write
    if bias is not None:
        bytes_accessed += Np * jnp.dtype(bias.dtype).itemsize * gm * gk
    cost = pl.CostEstimate(flops=2 * Mp * Np * Kp, transcendentals=0,
                           bytes_accessed=int(bytes_accessed))

    kernel = _make_linear_kernel(bias is not None, use_acc, compute_dtype)

    out = pl.pallas_call(
        kernel,
        out_shape=jax.ShapeDtypeStruct((Mp, Np), out_dtype),
        grid_spec=pltpu.PrefetchScalarGridSpec(
            num_scalar_prefetch=0,
            grid=(gm, gn, gk),
            in_specs=in_specs,
            out_specs=o_spec,
            scratch_shapes=scratch_shapes,
        ),
        compiler_params=pltpu.CompilerParams(
            dimension_semantics=("parallel", "parallel", "arbitrary"),
            vmem_limit_bytes=32 * 1024 * 1024,
        ),
        cost_estimate=cost,
    )(*operands)

    if Mp != B or Np != N:
        out = out[:B, :N]
    return out.reshape(*lead, N)


if __name__ == "__main__":
    # Small shapes consistent with nn.Linear(in_features, out_features, bias)
    batch = 8
    in_features = 32
    out_features = 64

    key = jax.random.PRNGKey(0)
    kx, kw, kb = jax.random.split(key, 3)

    x = jax.random.normal(kx, (batch, in_features), dtype=jnp.float32)
    bound = 1.0 / (in_features ** 0.5)
    weight = jax.random.uniform(kw, (out_features, in_features),
                                minval=-bound, maxval=bound, dtype=jnp.float32)
    bias = jax.random.uniform(kb, (out_features,),
                              minval=-bound, maxval=bound, dtype=jnp.float32)

    y_ref = x @ weight.T + bias

    # 1) Default path: bf16 MXU operands (in-kernel cast), f32 accumulation.
    y_bf16 = pallas_linear(x, weight, bias)
    jax.block_until_ready(y_bf16)
    assert y_bf16.shape == (batch, out_features)
    assert jnp.allclose(y_bf16, y_ref, atol=5e-2, rtol=5e-2)

    # 2) Exact f32 path (compute_dtype=float32), tight tolerance.
    y_f32 = pallas_linear(x, weight, bias, compute_dtype=jnp.float32)
    jax.block_until_ready(y_f32)
    assert jnp.allclose(y_f32, y_ref, atol=1e-5, rtol=1e-5)

    # 3) bias=False path (nn.Linear(bias=False)).
    y_nb = pallas_linear(x, weight, None, compute_dtype=jnp.float32)
    jax.block_until_ready(y_nb)
    assert jnp.allclose(y_nb, x @ weight.T, atol=1e-5, rtol=1e-5)

    # 4) Persistent-parameter style: weight pre-cast to bf16 ONCE outside the
    #    jit (halves weight HBM traffic; no per-call wrapper astype/pad).
    w_bf16 = weight.astype(jnp.bfloat16)
    y_pc = pallas_linear(x, w_bf16, bias)
    jax.block_until_ready(y_pc)
    assert jnp.allclose(y_pc, y_ref, atol=5e-2, rtol=5e-2)

    print("KERNEL_OK")
</pallas_src>

<mosaic_0001>
module attributes {stable_mosaic.version = 11 : i64} {
  func.func @kernel(%arg0: i32, %arg1: i32, %arg2: i32, %arg3: memref<8x32xf32, #tpu.memory_space<vmem>>, %arg4: memref<64x32xf32, #tpu.memory_space<vmem>>, %arg5: memref<1x64xf32, #tpu.memory_space<vmem>>, %arg6: memref<8x64xf32, #tpu.memory_space<vmem>>) attributes {dimension_semantics = [#tpu.dimension_semantics<parallel>, #tpu.dimension_semantics<parallel>, #tpu.dimension_semantics<arbitrary>], iteration_bounds = array<i64: 1, 1, 1>, scalar_prefetch = 0 : i64, scratch_operands = 0 : i64, tpu.core_type = #tpu.core_type<tc>, window_params = [{transform_indices = @transform_0, window_bounds = array<i64: 8, 32>}, {transform_indices = @transform_1, window_bounds = array<i64: 64, 32>}, {transform_indices = @transform_2, window_bounds = array<i64: 1, 64>}, {transform_indices = @transform_3, window_bounds = array<i64: 8, 64>}]} {
    %c0_i32 = arith.constant 0 : i32
    %0 = arith.cmpi eq, %arg2, %c0_i32 : i32
    %1 = arith.extui %0 : i1 to i32
    %c0_i32_0 = arith.constant 0 : i32
    %2 = arith.cmpi ne, %1, %c0_i32_0 : i32
    scf.if %2 {
      %c0_8 = arith.constant 0 : index
      %c0_9 = arith.constant 0 : index
      %11 = vector.load %arg5[%c0_8, %c0_9] : memref<1x64xf32, #tpu.memory_space<vmem>>, vector<1x64xf32>
      %12 = vector.shape_cast %11 : vector<1x64xf32> to vector<1x64xf32>
      %13 = vector.broadcast %12 : vector<1x64xf32> to vector<8x64xf32>
      %c0_10 = arith.constant 0 : index
      %c0_11 = arith.constant 0 : index
      %14 = vector.load %arg6[%c0_10, %c0_11] : memref<8x64xf32, #tpu.memory_space<vmem>>, vector<8x64xf32>
      tpu.vector_store %arg6[%c0_10, %c0_11], %13 {strides = array<i32>} : memref<8x64xf32, #tpu.memory_space<vmem>>, vector<8x64xf32>,
    } else {
    }
    %c0 = arith.constant 0 : index
    %c0_1 = arith.constant 0 : index
    %3 = vector.load %arg3[%c0, %c0_1] : memref<8x32xf32, #tpu.memory_space<vmem>>, vector<8x32xf32>
    %4 = arith.truncf %3 : vector<8x32xf32> to vector<8x32xbf16>
    %c0_2 = arith.constant 0 : index
    %c0_3 = arith.constant 0 : index
    %5 = vector.load %arg4[%c0_2, %c0_3] : memref<64x32xf32, #tpu.memory_space<vmem>>, vector<64x32xf32>
    %6 = arith.truncf %5 : vector<64x32xf32> to vector<64x32xbf16>
    %c0_4 = arith.constant 0 : index
    %c0_5 = arith.constant 0 : index
    %7 = vector.load %arg6[%c0_4, %c0_5] : memref<8x64xf32, #tpu.memory_space<vmem>>, vector<8x64xf32>
    %cst = arith.constant dense<0.000000e+00> : vector<8x64xf32>
    %8 = tpu.matmul %4, %6, %cst {dimension_numbers = #tpu.dot_dimension_numbers<[1], [1], [0], [0], [0, 0, 1, 0], [], []>} : vector<8x32xbf16>, vector<64x32xbf16>, vector<8x64xf32> -> vector<8x64xf32>
    %9 = arith.addf %7, %8 : vector<8x64xf32>
    %c0_6 = arith.constant 0 : index
    %c0_7 = arith.constant 0 : index
    %10 = vector.load %arg6[%c0_6, %c0_7] : memref<8x64xf32, #tpu.memory_space<vmem>>, vector<8x64xf32>
    tpu.vector_store %arg6[%c0_6, %c0_7], %9 {strides = array<i32>} : memref<8x64xf32, #tpu.memory_space<vmem>>, vector<8x64xf32>,
    return
  }
  func.func @transform_0(%arg0: i32, %arg1: i32, %arg2: i32) -> (i32, i32) {
    %c0_i32 = arith.constant 0 : i32
    return %arg0, %arg2 : i32, i32
  }
  func.func @transform_1(%arg0: i32, %arg1: i32, %arg2: i32) -> (i32, i32) {
    %c0_i32 = arith.constant 0 : i32
    return %arg1, %arg2 : i32, i32
  }
  func.func @transform_2(%arg0: i32, %arg1: i32, %arg2: i32) -> (i32, i32) {
    %c0_i32 = arith.constant 0 : i32
    %c0_i32_0 = arith.constant 0 : i32
    return %c0_i32, %arg1 : i32, i32
  }
  func.func @transform_3(%arg0: i32, %arg1: i32, %arg2: i32) -> (i32, i32) {
    %c0_i32 = arith.constant 0 : i32
    return %arg0, %arg1 : i32, i32
  }
}

</mosaic_0001>

<llo_original>
// kernel: pallas_linear.1
$region0: #{pallas_linear.1}
  #allocation0 [shape = 'u32[]', space=smem, size = 0x4, offset = 0x4, fixed_abs, tag = 'smem constant byte address 0x4 - core index']
  #allocation1 [shape = 'u32[144,128]{1,0:T(1,128)}', space=vmem, size = 0x12000, scoped, tag = 'internal scratch']
  %s0 = inlined_call_operand.vmem [shape: f32[8,32], index: 0, kind: input, shape index: {}]
  %s1 = inlined_call_operand.vmem [shape: f32[64,32], index: 1, kind: input, shape index: {}]
  %s2 = inlined_call_operand.vmem [shape: f32[1,64], index: 2, kind: input, shape index: {}]
  %s3 = inlined_call_operand.hbm [shape: f32[8,64], index: 3, kind: output, shape index: {}]
  %s4 = sld [smem:[#allocation0]]
  $region26: #{pallas_linear.1} parent=0
    _
  %s6 = ssub.s32 1, %s4
  %s7 = scalar_select 0, %s6, %s4
  $region1: #{pallas_linear.1} parent=0
    #allocation2 [shape = 'u8[4096]{0}', space=vmem, size = 0x1000, scoped, tag = 'output window, operand 0, single buffered']
    #allocation3 [shape = 's32[1]{0}', space=sflag, size = 0x4, scoped, tag = 'scoped memory for pallas_linear.1']
    %8 = vsyncpa [#allocation3], 0
    // Predicated region
    $region2: #{pallas_linear.1} parent=1 // pred_check
      _
    $region3: #{pallas_linear.1} parent=1 // pred_check_branch
      %10 = sbr.rel (0) target = $region5
    $region4: #{pallas_linear.1} parent=1 // pred_region
      _
    $region5: #{pallas_linear.1} parent=1 // pred_fallthru
      _
    // Predicated region
    $region6: #{pallas_linear.1} parent=1 // pred_check
      _
    $region7: #{pallas_linear.1} parent=1 // pred_check_branch
      %12 = sbr.rel (0) target = $region9
    $region8: #{pallas_linear.1} parent=1 // pred_region
      _
    $region9: #{pallas_linear.1} parent=1 // pred_fallthru
      _
    // Predicated region
    $region10: #{pallas_linear.1} parent=1 // pred_check
      _
    $region11: #{pallas_linear.1} parent=1 // pred_check_branch
      %14 = sbr.rel (0) target = $region13
    $region12: #{pallas_linear.1} parent=1 // pred_region
      _
    $region13: #{pallas_linear.1} parent=1 // pred_fallthru
      _
    %p16 = scmp.eq.s32.totalorder 0, 0
    // Predicated region
    $region14: #{pallas_linear.1} parent=1 // pred_check
      %p17 = pneg %p16
    $region15: #{pallas_linear.1} parent=1 // pred_check_branch
      %19 = sbr.rel (%p17) target = $region17
    $region16: #{pallas_linear.1} parent=1 // pred_region
      %v20 = vld [vmem:[%s2] sm:$0x1]
      %v22 = vlaneseq
      %v23 = vshrl.u32 %v22, 7
      %v24 = vsub.s32 0, %v23
      %v25 = vrot.slane %v20, %v24
      %vm27 = vcmask 523264
      %28 = vst.msk [vmem:[#allocation2] sm:$0xff] %vm27, %v25
    $region17: #{pallas_linear.1} parent=1 // pred_fallthru
      _
    %v29 = vld [vmem:[%s0] sm:$0xff]
    %v30 = vpack.c.bf16 %v29, %v29
    %v31 = vld [vmem:[%s1] sm:$0xff]
    %v32 = vld [vmem:[%s1 + $0x8] sm:$0xff]
    %v33 = vld [vmem:[%s1 + $0x10] sm:$0xff]
    %v34 = vld [vmem:[%s1 + $0x18] sm:$0xff]
    %v35 = vld [vmem:[%s1 + $0x20] sm:$0xff]
    %v36 = vld [vmem:[%s1 + $0x28] sm:$0xff]
    %v37 = vld [vmem:[%s1 + $0x30] sm:$0xff]
    %v38 = vld [vmem:[%s1 + $0x38] sm:$0xff]
    %v39 = vpack.c.bf16 %v32, %v31
    %v40 = vpack.c.bf16 %v34, %v33
    %v41 = vpack.c.bf16 %v36, %v35
    %v42 = vpack.c.bf16 %v38, %v37
    %v43 = vld [vmem:[#allocation2] sm:$0xff]
    %vm44 = vcmask 261120
    %v46 = vsel %vm44, %v30, 0
    %v49 = vsel %vm44, %v39, 0
    %v52 = vsel %vm44, %v40, 0
    %v55 = vsel %vm44, %v41, 0
    %v58 = vsel %vm44, %v42, 0
    %60 = vmatprep.subr.bf16.mxu0 0
    %61 = vmatpush1.bf16.xpose.msra.mxu0 %v49
    %62 = vmatprep.subr.bf16.mxu0 0
    %63 = vmatpush1.bf16.xpose.msra.mxu0 %v52
    %64 = vmatprep.subr.bf16.mxu0 0
    %65 = vmatpush1.bf16.xpose.msra.mxu0 %v55
    %66 = vmatprep.subr.bf16.mxu0 0
    %67 = vmatpush1.bf16.xpose.msra.mxu0 %v58
    %68 = vmatprep.subr.bf16.mxu0 0
    %69 = vmatpush1.bf16.xpose.msra.mxu0 0
    %70 = vmatprep.subr.bf16.mxu0 0
    %71 = vmatpush1.bf16.xpose.msra.mxu0 0
    %72 = vmatprep.subr.bf16.mxu0 0
    %73 = vmatpush1.bf16.xpose.msra.mxu0 0
    %74 = vmatprep.subr.bf16.mxu0 0
    %75 = vmatpush1.bf16.xpose.msra.mxu0 0
    %76 = vmatprep.subr.bf16.mxu0 0
    %77 = vmatpush1.bf16.xpose.msra.mxu0 0
    %78 = vmatprep.subr.bf16.mxu0 0
    %79 = vmatpush1.bf16.xpose.msra.mxu0 0
    %80 = vmatprep.subr.bf16.mxu0 0
    %81 = vmatpush1.bf16.xpose.msra.mxu0 0
    %82 = vmatprep.subr.bf16.mxu0 0
    %83 = vmatpush1.bf16.xpose.msra.mxu0 0
    %84 = vmatprep.subr.bf16.mxu0 0
    %85 = vmatpush1.bf16.xpose.msra.mxu0 0
    %86 = vmatprep.subr.bf16.mxu0 0
    %87 = vmatpush1.bf16.xpose.msra.mxu0 0
    %88 = vmatprep.subr.bf16.mxu0 0
    %89 = vmatpush1.bf16.xpose.msra.mxu0 0
    %90 = vmatprep.subr.bf16.mxu0 0
    %91 = vmatpush1.bf16.xpose.msra.mxu0 0
    %92 = vmatprep.mubr.bf16.mxu0 0
    %93 = vmatmul.mubr.bf16.gmra.mrb[0].mxu0 %v46
    %v94 = vpop.f32.mrb[0].mxu0
    %v95 = vadd.f32 0.0, %v94
    %v96 = vpop.f32.mrb[0].mxu0
    %v97 = vpop.f32.mrb[0].mxu0
    %v98 = vpop.f32.mrb[0].mxu0
    %99 = vdwg.mxu0
    %v100 = vadd.f32 %v43, %v95
    %vm101 = vcmask 523264
    %102 = vst.msk [vmem:[#allocation2] sm:$0xff] %vm101, %v100
    // Predicated region
    $region18: #{pallas_linear.1} parent=1 // pred_check
      _
    $region19: #{pallas_linear.1} parent=1 // pred_check_branch
      %104 = sbr.rel (0) target = $region21
    $region20: #{pallas_linear.1} parent=1 // pred_region
      %s106 = ssub.s32 128, 128
      %107 = vsyncadd [#allocation3], %s106
      %s109 = sshll.u32 [#allocation2], 4
      %s110 = int_to_ptr.vmem [resolvable:$true] %s109
      %112 = dma.vmem_to_hbm [thread:$0]  %s110, 128, %s3, [#allocation3]
    $region21: #{pallas_linear.1} parent=1 // pred_fallthru
      _
    // Predicated region
    $region22: #{pallas_linear.1} parent=1 // pred_check
      _
    $region23: #{pallas_linear.1} parent=1 // pred_check_branch
      %114 = sbr.rel (0) target = $region25
    $region24: #{pallas_linear.1} parent=1 // pred_region
      %115 = dma.done [#allocation3], 128
    $region25: #{pallas_linear.1} parent=1 // pred_fallthru
      _
    %116 = vsyncpa [#allocation3], 1

</llo_original>
